<compile_context>
chip_gen: v5e
topology: v5e:2x2
jax: 0.10.0
libtpu: 0.0.40
codegen_flags: <defaults>
</compile_context>

<pallas_src>
import math

import jax
import jax.numpy as jnp
from jax.experimental import pallas as pl
from jax.experimental.pallas import tpu as pltpu

_TARGET_BLOCK_BYTES = 2 * 1024 * 1024   # ~2 MiB per x/out buffer (mem-bound sweet spot)
_VMEM_LIMIT_BYTES = 32 * 1024 * 1024    # safe on v5e / v6e / v7x


def _ceil_div(a: int, b: int) -> int:
    return -(-a // b)


def _round_up(a: int, m: int) -> int:
    return _ceil_div(a, m) * m


def _scale_kernel(scale_ref, x_ref, o_ref):
    # scale_ref: (TR, 1) float32 per-row scale (0 or 1/keep_prob).
    # x_ref / o_ref: (TR, TC) tile in x's dtype.
    # Multiply in f32 (jnp promotion), cast the product exactly once.
    o_ref[...] = (x_ref[...] * scale_ref[...]).astype(o_ref.dtype)


def _launch_row_scale(x2d, scale_col):
    """out[r, c] = x2d[r, c] * scale_col[r, 0], tiled as an HBM stream."""
    R, C = x2d.shape
    itemsize = x2d.dtype.itemsize
    pack = {4: 8, 2: 16, 1: 32}.get(itemsize, 8)   # sublane granularity per dtype
    row_bytes = C * itemsize

    if row_bytes * pack <= 2 * _TARGET_BLOCK_BYTES:
        # Full rows per block; tile only along the (folded batch) row axis.
        tc = C
        tr_target = max(pack, _TARGET_BLOCK_BYTES // max(row_bytes, 1))
        if R <= tr_target:
            tr = R
            # Give v7x's two TensorCores something to split when everything
            # would otherwise collapse into a single grid step.
            if R >= 2 * pack and R * row_bytes >= (1 << 20):
                tr = _round_up(_ceil_div(R, 2), pack)
        else:
            ntiles = _ceil_div(R, tr_target)          # even-ish division, no sliver tail
            tr = _round_up(_ceil_div(R, ntiles), pack)
    else:
        # A single pack of rows already exceeds the budget; tile the lane axis.
        # Budget against the sublane-padded VMEM footprint (rows pad to `pack`).
        tr = R if R <= pack else pack
        tc_target = max(128, (_TARGET_BLOCK_BYTES // (pack * itemsize)) // 128 * 128)
        if C <= tc_target:
            tc = C
        else:
            ntiles = _ceil_div(C, tc_target)
            tc = _round_up(_ceil_div(C, ntiles), 128)

    grid = (_ceil_div(R, tr), _ceil_div(C, tc))

    return pl.pallas_call(
        _scale_kernel,
        out_shape=jax.ShapeDtypeStruct((R, C), x2d.dtype),
        grid_spec=pltpu.PrefetchScalarGridSpec(
            num_scalar_prefetch=0,
            grid=grid,
            in_specs=[
                pl.BlockSpec((tr, 1), lambda r, c: (r, 0)),    # per-row scale (f32)
                pl.BlockSpec((tr, tc), lambda r, c: (r, c)),   # data tile
            ],
            out_specs=pl.BlockSpec((tr, tc), lambda r, c: (r, c)),
        ),
        compiler_params=pltpu.CompilerParams(
            dimension_semantics=("parallel", "parallel"),
            vmem_limit_bytes=_VMEM_LIMIT_BYTES,
        ),
    )(scale_col, x2d)


def drop_path(x, drop_prob: float = 0.0, training: bool = False,
              *, key=None, seed: int = 0):
    """Pallas implementation of drop_path (per-sample stochastic depth)."""
    if drop_prob == 0.0 or not training:
        return x
    if not jnp.issubdtype(x.dtype, jnp.floating):
        raise TypeError(f"drop_path expects a floating dtype, got {x.dtype}")
    if x.size == 0:
        return x

    keep_prob = 1.0 - drop_prob
    B = x.shape[0]
    n = math.prod(x.shape[1:]) if x.ndim > 1 else 1

    # Per-sample Bernoulli(keep_prob) via the same floor trick as the torch ref,
    # folded directly into an f32 scale (0 or 1/keep_prob).
    if key is None:
        key = jax.random.PRNGKey(seed)
    u = jax.random.uniform(key, (B,), dtype=jnp.float32)
    keep = jnp.floor(jnp.float32(keep_prob) + u)
    scale = keep * jnp.float32(1.0 / keep_prob)            # (B,) f32

    if n % 128 == 0:
        # Fast path: fold batch and sample into lane-dense rows of 128.
        rows_per_sample = n // 128
        x2d = x.reshape(B * rows_per_sample, 128)
        scale_col = jnp.repeat(scale, rows_per_sample).reshape(-1, 1)
    else:
        # Ragged per-sample size: keep a (B, n) view; Pallas masks the partial
        # trailing block, so there is no extra pad/slice pass over HBM.
        x2d = x.reshape(B, n)
        scale_col = scale.reshape(B, 1)

    out = _launch_row_scale(x2d, scale_col)
    return out.reshape(x.shape)


class DropPath:
    """Thin module-like wrapper mirroring the PyTorch DropPath class."""

    def __init__(self, drop_prob: float = 0.0):
        self.drop_prob = drop_prob
        self.training = True

    def __call__(self, x, *, key=None, seed: int = 0):
        # TODO(synk): callers should thread a fresh PRNG key per step; the
        # default seed reuses the same per-sample mask across calls.
        return drop_path(x, self.drop_prob, self.training, key=key, seed=seed)


if __name__ == "__main__":
    key = jax.random.PRNGKey(0)
    # Same convention / small shape as the PyTorch spec: x = torch.randn(2, 8, 8, 8)
    x = jax.random.normal(key, (2, 8, 8, 8), dtype=jnp.float32)

    # eval / drop_prob == 0 path: identity (no kernel launch)
    y_eval = drop_path(x, drop_prob=0.5, training=False)
    assert jnp.allclose(y_eval, x)

    # training path: Pallas kernel does the per-sample scale (n % 128 == 0 path)
    drop_prob = 0.25
    keep_prob = 1.0 - drop_prob
    mod = DropPath(drop_prob)
    y = jax.block_until_ready(mod(x, seed=42))
    assert y.shape == x.shape and y.dtype == x.dtype
    for b in range(x.shape[0]):
        kept = bool(jnp.allclose(y[b], x[b] / keep_prob, atol=1e-5))
        dropped = bool(jnp.allclose(y[b], 0.0))
        assert kept or dropped, f"sample {b} is neither kept nor dropped"

    # ragged path (per-sample size not a multiple of 128): no pad/slice pass
    x2 = jax.random.normal(jax.random.PRNGKey(1), (4, 3, 5, 7), dtype=jnp.float32)
    kp2 = 0.5
    y2 = jax.block_until_ready(drop_path(x2, drop_prob=0.5, training=True, seed=7))
    assert y2.shape == x2.shape and y2.dtype == x2.dtype
    for b in range(x2.shape[0]):
        kept = bool(jnp.allclose(y2[b], x2[b] / kp2, atol=1e-5))
        dropped = bool(jnp.allclose(y2[b], 0.0))
        assert kept or dropped, f"ragged sample {b} is neither kept nor dropped"

    print("KERNEL_OK")
</pallas_src>

<mosaic_0001>
module attributes {stable_mosaic.version = 11 : i64} {
  func.func @_scale_kernel(%arg0: i32, %arg1: i32, %arg2: memref<8x1xf32, #tpu.memory_space<vmem>>, %arg3: memref<8x128xf32, #tpu.memory_space<vmem>>, %arg4: memref<8x128xf32, #tpu.memory_space<vmem>>) attributes {dimension_semantics = [#tpu.dimension_semantics<parallel>, #tpu.dimension_semantics<parallel>], iteration_bounds = array<i64: 1, 1>, scalar_prefetch = 0 : i64, scratch_operands = 0 : i64, tpu.core_type = #tpu.core_type<tc>, window_params = [{transform_indices = @transform_0, window_bounds = array<i64: 8, 1>}, {transform_indices = @transform_1, window_bounds = array<i64: 8, 128>}, {transform_indices = @transform_2, window_bounds = array<i64: 8, 128>}]} {
    %c0 = arith.constant 0 : index
    %c0_0 = arith.constant 0 : index
    %0 = vector.load %arg3[%c0, %c0_0] : memref<8x128xf32, #tpu.memory_space<vmem>>, vector<8x128xf32>
    %c0_1 = arith.constant 0 : index
    %c0_2 = arith.constant 0 : index
    %1 = vector.load %arg2[%c0_1, %c0_2] : memref<8x1xf32, #tpu.memory_space<vmem>>, vector<8x1xf32>
    %2 = vector.broadcast %1 : vector<8x1xf32> to vector<8x128xf32>
    %3 = arith.mulf %0, %2 : vector<8x128xf32>
    %c0_3 = arith.constant 0 : index
    %c0_4 = arith.constant 0 : index
    %4 = vector.load %arg4[%c0_3, %c0_4] : memref<8x128xf32, #tpu.memory_space<vmem>>, vector<8x128xf32>
    tpu.vector_store %arg4[%c0_3, %c0_4], %3 {strides = array<i32>} : memref<8x128xf32, #tpu.memory_space<vmem>>, vector<8x128xf32>,
    return
  }
  func.func @transform_0(%arg0: i32, %arg1: i32) -> (i32, i32) {
    %c0_i32 = arith.constant 0 : i32
    %c0_i32_0 = arith.constant 0 : i32
    return %arg0, %c0_i32 : i32, i32
  }
  func.func @transform_1(%arg0: i32, %arg1: i32) -> (i32, i32) {
    %c0_i32 = arith.constant 0 : i32
    return %arg0, %arg1 : i32, i32
  }
  func.func @transform_2(%arg0: i32, %arg1: i32) -> (i32, i32) {
    %c0_i32 = arith.constant 0 : i32
    return %arg0, %arg1 : i32, i32
  }
}

</mosaic_0001>

<llo_original>
// kernel: tpu_custom_call.1
$region0: #{tpu_custom_call.1}
  #allocation0 [shape = 'u32[]', space=smem, size = 0x4, offset = 0x4, fixed_abs, tag = 'smem constant byte address 0x4 - core index']
  #allocation1 [shape = 'u32[72,128]{1,0:T(1,128)}', space=vmem, size = 0x9000, scoped, tag = 'internal scratch']
  %s0 = inlined_call_operand.vmem [shape: f32[8,1], index: 0, kind: input, shape index: {}]
  %s1 = inlined_call_operand.vmem [shape: f32[8,128], index: 1, kind: input, shape index: {}]
  %s2 = inlined_call_operand.hbm [shape: f32[8,128], index: 2, kind: output, shape index: {}]
  %s3 = sld [smem:[#allocation0]]
  $region18: #{tpu_custom_call.1} parent=0
    _
  %s5 = ssub.s32 1, %s3
  %s6 = scalar_select 0, %s5, %s3
  $region1: #{tpu_custom_call.1} parent=0
    #allocation2 [shape = 'u8[4096]{0}', space=vmem, size = 0x1000, scoped, tag = 'output window, operand 0, single buffered']
    #allocation3 [shape = 's32[1]{0}', space=sflag, size = 0x4, scoped, tag = 'scoped memory for tpu_custom_call.1']
    %7 = vsyncpa [#allocation3], 0
    // Predicated region
    $region2: #{tpu_custom_call.1} parent=1 // pred_check
      _
    $region3: #{tpu_custom_call.1} parent=1 // pred_check_branch
      %9 = sbr.rel (0) target = $region5
    $region4: #{tpu_custom_call.1} parent=1 // pred_region
      _
    $region5: #{tpu_custom_call.1} parent=1 // pred_fallthru
      _
    // Predicated region
    $region6: #{tpu_custom_call.1} parent=1 // pred_check
      _
    $region7: #{tpu_custom_call.1} parent=1 // pred_check_branch
      %11 = sbr.rel (0) target = $region9
    $region8: #{tpu_custom_call.1} parent=1 // pred_region
      _
    $region9: #{tpu_custom_call.1} parent=1 // pred_fallthru
      _
    %v12 = vld [vmem:[%s1] sm:$0xff]
    %v13 = vld [vmem:[%s0] sm:$0xff]
    %15 = vset.pattern.permute.xlu0 0
    %16 = vperm.xlu0 %15, %v13
    %v17 = vpop.permute.xlu0 %16
    %v19 = vmul.f32 %v12, %v17
    %20 = vst [vmem:[#allocation2] sm:$0xff] %v19
    // Predicated region
    $region10: #{tpu_custom_call.1} parent=1 // pred_check
      _
    $region11: #{tpu_custom_call.1} parent=1 // pred_check_branch
      %22 = sbr.rel (0) target = $region13
    $region12: #{tpu_custom_call.1} parent=1 // pred_region
      %24 = vsyncadd [#allocation3], 0
      %s26 = sshll.u32 [#allocation2], 4
      %s27 = int_to_ptr.vmem [resolvable:$true] %s26
      %s28 = sshll.u32 %s2, 4
      %s29 = int_to_ptr.hbm [resolvable:$true] %s28
      %31 = dma.vmem_to_hbm [thread:$0]  %s27, 128, %s29, [#allocation3]
    $region13: #{tpu_custom_call.1} parent=1 // pred_fallthru
      _
    // Predicated region
    $region14: #{tpu_custom_call.1} parent=1 // pred_check
      _
    $region15: #{tpu_custom_call.1} parent=1 // pred_check_branch
      %33 = sbr.rel (0) target = $region17
    $region16: #{tpu_custom_call.1} parent=1 // pred_region
      %35 = dma.done [#allocation3], 128
    $region17: #{tpu_custom_call.1} parent=1 // pred_fallthru
      _
    %36 = vsyncpa [#allocation3], 1

</llo_original>
